<compile_context>
chip_gen: v6e
topology: v6e:2x2x1
jax: 0.10.0
libtpu: 0.0.40
codegen_flags: <defaults>
</compile_context>

<pallas_src>
import functools

import jax
import jax.numpy as jnp
from jax.experimental import pallas as pl
from jax.experimental.pallas import tpu as pltpu

_LANES = 128
_FOLD_ROWS = 64          # rows folded per inner-loop iteration (8 f32 vregs)
_MAX_BLOCK_ROWS = 8192   # 8192 * 128 * 4 B = 4 MiB per tensor per block


def _round_up(x, m):
    return ((x + m - 1) // m) * m


def _sublane_pack(dtype):
    """Minimum sublane multiple for this dtype's packed (sublane, 128) tile."""
    itemsize = jnp.dtype(dtype).itemsize
    return max(8, 32 // max(itemsize, 1))   # f32 -> 8, bf16 -> 16, int8 -> 32


def _fold_sse(acc_ref, x_ref, rows, target):
    """acc_ref[(8,128) f32] += sum over x_ref[:rows, :] of (x - target)^2.

    `rows` is a static Python int (multiple of the dtype's sublane pack).
    Explicit fori_loop over 64-row slabs with a vreg-resident (8,128) carry,
    so it lowers to aligned vector loads + VPU mul/add only.
    """
    def slab_sq(off, nrows):
        x = x_ref[pl.ds(off, nrows), :].astype(jnp.float32)
        d = x if target == 0.0 else x - jnp.float32(target)
        sq = d * d
        # (nrows,128) -> (nrows//8, 8, 128): splits the sublane-major axis, so
        # it is layout-preserving; sum(axis=0) is a tree of vreg adds.
        return sq.reshape(nrows // 8, 8, _LANES).sum(axis=0)

    nfull = rows // _FOLD_ROWS
    rem = rows % _FOLD_ROWS

    acc = acc_ref[...]
    if nfull > 0:
        def body(k, a):
            off = pl.multiple_of(k * _FOLD_ROWS, _FOLD_ROWS)
            return a + slab_sq(off, _FOLD_ROWS)
        acc = jax.lax.fori_loop(0, nfull, body, acc)
    if rem > 0:
        acc = acc + slab_sq(nfull * _FOLD_ROWS, rem)
    acc_ref[...] = acc


def _disc_loss_kernel(fake_ref, real_ref, out_ref, acc_f_ref, acc_r_ref, *,
                      num_blocks, block_rows, last_rows, inv_2nf, inv_2nr):
    i = pl.program_id(0)

    @pl.when(i == 0)
    def _init():
        acc_f_ref[...] = jnp.zeros_like(acc_f_ref)
        acc_r_ref[...] = jnp.zeros_like(acc_r_ref)

    def accumulate(rows):
        _fold_sse(acc_f_ref, fake_ref, rows, 0.0)   # fake target = 0
        _fold_sse(acc_r_ref, real_ref, rows, 1.0)   # real target = 1

    if last_rows == block_rows:
        # Exact tiling: every block runs the mask-free fast path.
        accumulate(block_rows)
    else:
        # Ragged last block: handled with a statically-shorter fold so the
        # interior blocks stay completely mask/iota-free.
        @pl.when(i < num_blocks - 1)
        def _interior():
            accumulate(block_rows)

        @pl.when(i == num_blocks - 1)
        def _tail():
            accumulate(last_rows)

    @pl.when(i == num_blocks - 1)
    def _finalize():
        # Final cross-lane/sublane reduce + combine, in-kernel (XLU is idle).
        loss = (jnp.sum(acc_f_ref[...]) * inv_2nf
                + jnp.sum(acc_r_ref[...]) * inv_2nr)
        out_ref[0, 0] = loss


def _lane_rows_view(x, target, total_rows):
    """Row-major flatten to a lane-dense (total_rows, 128) view.

    Padding (only when required) uses the MSE target value, so padded
    elements contribute exactly 0 to the squared-error sum.
    """
    flat = x.reshape(-1)
    padded_n = total_rows * _LANES
    if padded_n != flat.shape[0]:
        # TODO(synk): for very large non-lane-aligned inputs this pad is an
        # extra HBM copy; an aligned-prefix kernel + tiny XLA tail would avoid
        # it, but misaligned sizes are rare for conv patch maps.
        flat = jnp.pad(flat, (0, padded_n - flat.shape[0]),
                       constant_values=target)
    return flat.reshape(total_rows, _LANES)


@functools.partial(jax.jit, static_argnames=("max_block_rows",))
def disc_cgan_loss(fake_pred, real_pred, *, max_block_rows=_MAX_BLOCK_ROWS):
    n_f = int(fake_pred.size)
    n_r = int(real_pred.size)
    if n_f == 0 or n_r == 0:   # degenerate: mirror torch (NaN) without a kernel
        return 0.5 * (jnp.mean(jnp.square(fake_pred.astype(jnp.float32)))
                      + jnp.mean(jnp.square(real_pred.astype(jnp.float32) - 1.0)))

    pack = max(_sublane_pack(fake_pred.dtype), _sublane_pack(real_pred.dtype))
    rows = max(pl.cdiv(n_f, _LANES), pl.cdiv(n_r, _LANES))
    total_rows = _round_up(rows, pack)

    if total_rows <= max_block_rows:
        block_rows = total_rows                       # single block == full array
    else:
        # Balanced blocks (no tiny trailing block, no duplicated DMA).
        nb = pl.cdiv(total_rows, max_block_rows)
        block_rows = _round_up(pl.cdiv(total_rows, nb), pack)
    num_blocks = pl.cdiv(total_rows, block_rows)
    last_rows = total_rows - (num_blocks - 1) * block_rows

    fake2d = _lane_rows_view(fake_pred, 0.0, total_rows)
    real2d = _lane_rows_view(real_pred, 1.0, total_rows)

    kernel = functools.partial(
        _disc_loss_kernel,
        num_blocks=num_blocks, block_rows=block_rows, last_rows=last_rows,
        inv_2nf=0.5 / float(n_f), inv_2nr=0.5 / float(n_r))

    bytes_accessed = (fake2d.size * fake2d.dtype.itemsize
                      + real2d.size * real2d.dtype.itemsize + 4)

    out = pl.pallas_call(
        kernel,
        out_shape=jax.ShapeDtypeStruct((1, 1), jnp.float32),
        grid_spec=pltpu.PrefetchScalarGridSpec(
            num_scalar_prefetch=0,
            grid=(num_blocks,),
            in_specs=[pl.BlockSpec((block_rows, _LANES), lambda i: (i, 0)),
                      pl.BlockSpec((block_rows, _LANES), lambda i: (i, 0))],
            out_specs=pl.BlockSpec(memory_space=pltpu.MemorySpace.SMEM),
            scratch_shapes=[pltpu.VMEM((8, _LANES), jnp.float32),
                            pltpu.VMEM((8, _LANES), jnp.float32)]),
        compiler_params=pltpu.CompilerParams(
            dimension_semantics=("arbitrary",),
            vmem_limit_bytes=32 * 1024 * 1024),
        cost_estimate=pl.CostEstimate(
            flops=3 * (n_f + n_r), transcendentals=0,
            bytes_accessed=bytes_accessed),
    )(fake2d, real2d)

    return out[0, 0]


def _reference(fake_pred, real_pred):
    return 0.5 * (jnp.mean(jnp.square(fake_pred.astype(jnp.float32)))
                  + jnp.mean(jnp.square(real_pred.astype(jnp.float32) - 1.0)))


if __name__ == "__main__":
    key = jax.random.PRNGKey(0)
    ks = jax.random.split(key, 10)

    def check(fake, real, **kw):
        got = jax.block_until_ready(disc_cgan_loss(fake, real, **kw))
        want = _reference(fake, real)
        assert jnp.allclose(got, want, rtol=1e-5, atol=1e-6), (got, want)

    # 1) Small PatchGAN-style f32 patch map (lane-aligned numel).
    check(jax.random.normal(ks[0], (2, 1, 16, 16), dtype=jnp.float32),
          jax.random.normal(ks[1], (2, 1, 16, 16), dtype=jnp.float32))

    # 2) Misaligned numel (1800 % 128 != 0) -> target-value padding path.
    check(jax.random.normal(ks[2], (2, 1, 30, 30), dtype=jnp.float32),
          jax.random.normal(ks[3], (2, 1, 30, 30), dtype=jnp.float32))

    # 3) Multi-block grid with a ragged (statically shorter) last block,
    #    exercised at small scale by shrinking max_block_rows.
    check(jax.random.normal(ks[4], (2, 4, 16, 24), dtype=jnp.float32),
          jax.random.normal(ks[5], (2, 4, 16, 24), dtype=jnp.float32),
          max_block_rows=16)

    # 4) bf16 inputs (packed-sublane path, in-kernel cast to f32).
    check(jax.random.normal(ks[6], (2, 4, 16, 16), dtype=jnp.bfloat16),
          jax.random.normal(ks[7], (2, 4, 16, 16), dtype=jnp.bfloat16))

    # 5) fake / real with different shapes (smaller one padded with its target).
    check(jax.random.normal(ks[8], (2, 1, 16, 16), dtype=jnp.float32),
          jax.random.normal(ks[9], (2, 1, 8, 8), dtype=jnp.float32))

    # 6) Default-config hot loop (single 3072-row block, 48 fold iterations).
    check(jax.random.normal(jax.random.PRNGKey(1), (2, 3, 256, 256), jnp.float32),
          jax.random.normal(jax.random.PRNGKey(2), (2, 3, 256, 256), jnp.float32))

    print("KERNEL_OK")
</pallas_src>

<mosaic_0001>
module attributes {stable_mosaic.version = 11 : i64} {
  func.func @_disc_loss_kernel(%arg0: i32, %arg1: memref<8x128xf32, #tpu.memory_space<vmem>>, %arg2: memref<8x128xf32, #tpu.memory_space<vmem>>, %arg3: memref<1x1xf32, #tpu.memory_space<smem>>, %arg4: memref<8x128xf32, #tpu.memory_space<vmem>>, %arg5: memref<8x128xf32, #tpu.memory_space<vmem>>) attributes {dimension_semantics = [#tpu.dimension_semantics<arbitrary>], iteration_bounds = array<i64: 1>, scalar_prefetch = 0 : i64, scratch_operands = 2 : i64, tpu.core_type = #tpu.core_type<tc>, window_params = [{transform_indices = @transform_0, window_bounds = array<i64: 8, 128>}, {transform_indices = @transform_1, window_bounds = array<i64: 8, 128>}, {transform_indices = @transform_2, window_bounds = array<i64: 1, 1>}]} {
    %c0_i32 = arith.constant 0 : i32
    %0 = arith.cmpi eq, %arg0, %c0_i32 : i32
    %1 = arith.extui %0 : i1 to i32
    %c0_i32_0 = arith.constant 0 : i32
    %2 = arith.cmpi ne, %1, %c0_i32_0 : i32
    scf.if %2 {
      %cst_16 = arith.constant 0.000000e+00 : f32
      %22 = vector.broadcast %cst_16 : f32 to vector<8x128xf32>
      %c0_17 = arith.constant 0 : index
      %c0_18 = arith.constant 0 : index
      %23 = vector.load %arg4[%c0_17, %c0_18] : memref<8x128xf32, #tpu.memory_space<vmem>>, vector<8x128xf32>
      tpu.vector_store %arg4[%c0_17, %c0_18], %22 {strides = array<i32>} : memref<8x128xf32, #tpu.memory_space<vmem>>, vector<8x128xf32>,
      %cst_19 = arith.constant 0.000000e+00 : f32
      %24 = vector.broadcast %cst_19 : f32 to vector<8x128xf32>
      %c0_20 = arith.constant 0 : index
      %c0_21 = arith.constant 0 : index
      %25 = vector.load %arg5[%c0_20, %c0_21] : memref<8x128xf32, #tpu.memory_space<vmem>>, vector<8x128xf32>
      tpu.vector_store %arg5[%c0_20, %c0_21], %24 {strides = array<i32>} : memref<8x128xf32, #tpu.memory_space<vmem>>, vector<8x128xf32>,
    } else {
    }
    %c0 = arith.constant 0 : index
    %c0_1 = arith.constant 0 : index
    %3 = vector.load %arg4[%c0, %c0_1] : memref<8x128xf32, #tpu.memory_space<vmem>>, vector<8x128xf32>
    %c0_2 = arith.constant 0 : index
    %c0_3 = arith.constant 0 : index
    %4 = vector.load %arg1[%c0_2, %c0_3] : memref<8x128xf32, #tpu.memory_space<vmem>>, vector<8x128xf32>
    %5 = arith.mulf %4, %4 : vector<8x128xf32>
    %6 = vector.shape_cast %5 : vector<8x128xf32> to vector<1x8x128xf32>
    %cst = arith.constant dense<0.000000e+00> : vector<8x128xf32>
    %7 = vector.multi_reduction <add>, %6, %cst [0] : vector<1x8x128xf32> to vector<8x128xf32>
    %8 = arith.addf %3, %7 : vector<8x128xf32>
    %c0_4 = arith.constant 0 : index
    %c0_5 = arith.constant 0 : index
    %9 = vector.load %arg4[%c0_4, %c0_5] : memref<8x128xf32, #tpu.memory_space<vmem>>, vector<8x128xf32>
    tpu.vector_store %arg4[%c0_4, %c0_5], %8 {strides = array<i32>} : memref<8x128xf32, #tpu.memory_space<vmem>>, vector<8x128xf32>,
    %c0_6 = arith.constant 0 : index
    %c0_7 = arith.constant 0 : index
    %10 = vector.load %arg5[%c0_6, %c0_7] : memref<8x128xf32, #tpu.memory_space<vmem>>, vector<8x128xf32>
    %c0_8 = arith.constant 0 : index
    %c0_9 = arith.constant 0 : index
    %11 = vector.load %arg2[%c0_8, %c0_9] : memref<8x128xf32, #tpu.memory_space<vmem>>, vector<8x128xf32>
    %cst_10 = arith.constant 1.000000e+00 : f32
    %12 = vector.broadcast %cst_10 : f32 to vector<8x128xf32>
    %13 = arith.subf %11, %12 : vector<8x128xf32>
    %14 = arith.mulf %13, %13 : vector<8x128xf32>
    %15 = vector.shape_cast %14 : vector<8x128xf32> to vector<1x8x128xf32>
    %cst_11 = arith.constant dense<0.000000e+00> : vector<8x128xf32>
    %16 = vector.multi_reduction <add>, %15, %cst_11 [0] : vector<1x8x128xf32> to vector<8x128xf32>
    %17 = arith.addf %10, %16 : vector<8x128xf32>
    %c0_12 = arith.constant 0 : index
    %c0_13 = arith.constant 0 : index
    %18 = vector.load %arg5[%c0_12, %c0_13] : memref<8x128xf32, #tpu.memory_space<vmem>>, vector<8x128xf32>
    tpu.vector_store %arg5[%c0_12, %c0_13], %17 {strides = array<i32>} : memref<8x128xf32, #tpu.memory_space<vmem>>, vector<8x128xf32>,
    %c0_i32_14 = arith.constant 0 : i32
    %19 = arith.cmpi eq, %arg0, %c0_i32_14 : i32
    %20 = arith.extui %19 : i1 to i32
    %c0_i32_15 = arith.constant 0 : i32
    %21 = arith.cmpi ne, %20, %c0_i32_15 : i32
    scf.if %21 {
      %c0_16 = arith.constant 0 : index
      %c0_17 = arith.constant 0 : index
      %22 = vector.load %arg4[%c0_16, %c0_17] : memref<8x128xf32, #tpu.memory_space<vmem>>, vector<8x128xf32>
      %23 = vector.shape_cast %22 : vector<8x128xf32> to vector<1x8x128xf32>
      %cst_18 = arith.constant dense<0.000000e+00> : vector<1xf32>
      %24 = vector.multi_reduction <add>, %23, %cst_18 [1, 2] : vector<1x8x128xf32> to vector<1xf32>
      %25 = vector.shape_cast %24 : vector<1xf32> to vector<1x1x1xf32>
      %26 = vector.extract %25[0, 0, 0] : f32 from vector<1x1x1xf32>
      %cst_19 = arith.constant 9.765625E-4 : f32
      %27 = arith.mulf %26, %cst_19 : f32
      %c0_20 = arith.constant 0 : index
      %c0_21 = arith.constant 0 : index
      %28 = vector.load %arg5[%c0_20, %c0_21] : memref<8x128xf32, #tpu.memory_space<vmem>>, vector<8x128xf32>
      %29 = vector.shape_cast %28 : vector<8x128xf32> to vector<1x8x128xf32>
      %cst_22 = arith.constant dense<0.000000e+00> : vector<1xf32>
      %30 = vector.multi_reduction <add>, %29, %cst_22 [1, 2] : vector<1x8x128xf32> to vector<1xf32>
      %31 = vector.shape_cast %30 : vector<1xf32> to vector<1x1x1xf32>
      %32 = vector.extract %31[0, 0, 0] : f32 from vector<1x1x1xf32>
      %cst_23 = arith.constant 9.765625E-4 : f32
      %33 = arith.mulf %32, %cst_23 : f32
      %34 = arith.addf %27, %33 : f32
      %c0_24 = arith.constant 0 : index
      %c0_25 = arith.constant 0 : index
      %35 = memref.load %arg3[%c0_24, %c0_25] : memref<1x1xf32, #tpu.memory_space<smem>>
      memref.store %34, %arg3[%c0_24, %c0_25] : memref<1x1xf32, #tpu.memory_space<smem>>
    } else {
    }
    return
  }
  func.func @transform_0(%arg0: i32) -> (i32, i32) {
    %c0_i32 = arith.constant 0 : i32
    %c0_i32_0 = arith.constant 0 : i32
    return %arg0, %c0_i32 : i32, i32
  }
  func.func @transform_1(%arg0: i32) -> (i32, i32) {
    %c0_i32 = arith.constant 0 : i32
    %c0_i32_0 = arith.constant 0 : i32
    return %arg0, %c0_i32 : i32, i32
  }
  func.func @transform_2(%arg0: i32) -> (i32, i32) {
    %c0_i32 = arith.constant 0 : i32
    %c0_i32_0 = arith.constant 0 : i32
    %c0_i32_1 = arith.constant 0 : i32
    return %c0_i32, %c0_i32_0 : i32, i32
  }
}

</mosaic_0001>

<llo_original>
// kernel: disc_cgan_loss.1
$region0: #{disc_cgan_loss.1}
  #allocation0 [shape = 'u32[]', space=smem, size = 0x4, offset = 0x4, fixed_abs, tag = 'smem constant byte address 0x4 - core index']
  #allocation1 [shape = 'u32[144,128]{1,0:T(1,128)}', space=vmem, size = 0x12000, scoped, tag = 'internal scratch']
  #allocation2 [shape = 'f32[8,128]{1,0:T(8,128)}', space=vmem, size = 0x1000, scoped, tag = 'scratch operand']
  #allocation3 [shape = 'f32[8,128]{1,0:T(8,128)}', space=vmem, size = 0x1000, scoped, tag = 'scratch operand']
  %s0 = inlined_call_operand.vmem [shape: f32[8,128], index: 0, kind: input, shape index: {}]
  %s1 = inlined_call_operand.vmem [shape: f32[8,128], index: 1, kind: input, shape index: {}]
  %s2 = inlined_call_operand.hbm [shape: f32[1,1], index: 2, kind: output, shape index: {}]
  %s3 = sld [smem:[#allocation0]]
  $region26: #{disc_cgan_loss.1} parent=0
    _
  %s5 = ssub.s32 1, %s3
  %s6 = scalar_select 0, %s5, %s3
  $region1: #{disc_cgan_loss.1} parent=0
    #allocation4 [shape = 'u8[512]{0}', space=smem, size = 0x200, scoped, tag = 'output window, operand 0, single buffered']
    #allocation5 [shape = 's32[1]{0}', space=sflag, size = 0x4, scoped, tag = 'scoped memory for disc_cgan_loss.1']
    %7 = vsyncpa [#allocation5], 0
    // Predicated region
    $region2: #{disc_cgan_loss.1} parent=1 // pred_check
      _
    $region3: #{disc_cgan_loss.1} parent=1 // pred_check_branch
      %9 = sbr.rel (0) target = $region5
    $region4: #{disc_cgan_loss.1} parent=1 // pred_region
      _
    $region5: #{disc_cgan_loss.1} parent=1 // pred_fallthru
      _
    // Predicated region
    $region6: #{disc_cgan_loss.1} parent=1 // pred_check
      _
    $region7: #{disc_cgan_loss.1} parent=1 // pred_check_branch
      %11 = sbr.rel (0) target = $region9
    $region8: #{disc_cgan_loss.1} parent=1 // pred_region
      _
    $region9: #{disc_cgan_loss.1} parent=1 // pred_fallthru
      _
    %p12 = scmp.eq.s32.totalorder 0, 0
    // Predicated region
    $region10: #{disc_cgan_loss.1} parent=1 // pred_check
      %p13 = pneg %p12
    $region11: #{disc_cgan_loss.1} parent=1 // pred_check_branch
      %15 = sbr.rel (%p13) target = $region13
    $region12: #{disc_cgan_loss.1} parent=1 // pred_region
      %16 = vst [vmem:[#allocation2] sm:$0xff] 0.0
      %17 = vst [vmem:[#allocation3] sm:$0xff] 0.0
    $region13: #{disc_cgan_loss.1} parent=1 // pred_fallthru
      _
    %v18 = vld [vmem:[#allocation2] sm:$0xff]
    %v19 = vld [vmem:[%s0] sm:$0xff]
    %v20 = vmul.f32 %v19, %v19
    %v21 = vadd.f32 %v20, 0.0
    %v22 = vadd.f32 %v18, %v21
    %23 = vst [vmem:[#allocation2] sm:$0xff] %v22
    %v24 = vld [vmem:[#allocation3] sm:$0xff]
    %v25 = vld [vmem:[%s1] sm:$0xff]
    %v26 = vsub.f32 %v25, 1.0
    %v27 = vmul.f32 %v26, %v26
    %v28 = vadd.f32 %v27, 0.0
    %v29 = vadd.f32 %v24, %v28
    %30 = vst [vmem:[#allocation3] sm:$0xff] %v29
    // Predicated region
    $region14: #{disc_cgan_loss.1} parent=1 // pred_check
      %p31 = pneg %p12
    $region15: #{disc_cgan_loss.1} parent=1 // pred_check_branch
      %33 = sbr.rel (%p31) target = $region17
    $region16: #{disc_cgan_loss.1} parent=1 // pred_region
      %v34 = vld [vmem:[#allocation2] sm:$0xff]
      %35 = vadd.xlane.f32.xlu0 %v34
      %v36 = vpop.xlane.xlu0 %35
      %v37 = vrot.slane %v36, 4
      %v38 = vadd.f32 %v36, %v37
      %v39 = vrot.slane %v38, 2
      %v40 = vadd.f32 %v38, %v39
      %v41 = vrot.slane %v40, 1
      %v42 = vadd.f32 %v40, %v41
      %s43 = vtos %v42
      %s44 = smul.f32 %s43, 0.0009765625
      %v45 = vld [vmem:[#allocation3] sm:$0xff]
      %46 = vadd.xlane.f32.xlu0 %v45
      %v47 = vpop.xlane.xlu0 %46
      %v48 = vrot.slane %v47, 4
      %v49 = vadd.f32 %v47, %v48
      %v50 = vrot.slane %v49, 2
      %v51 = vadd.f32 %v49, %v50
      %v52 = vrot.slane %v51, 1
      %v53 = vadd.f32 %v51, %v52
      %s54 = vtos %v53
      %s55 = smul.f32 %s54, 0.0009765625
      %s56 = sadd.f32 %s44, %s55
      %s57 = scalar_lea.smem [#allocation4], 0
      %58 = sst [smem:[%s57]] %s56
    $region17: #{disc_cgan_loss.1} parent=1 // pred_fallthru
      _
    // Predicated region
    $region18: #{disc_cgan_loss.1} parent=1 // pred_check
      _
    $region19: #{disc_cgan_loss.1} parent=1 // pred_check_branch
      %60 = sbr.rel (0) target = $region21
    $region20: #{disc_cgan_loss.1} parent=1 // pred_region
      %s62 = ssub.s32 16, 16
      %63 = vsyncadd [#allocation5], %s62
      %66 = dma.smem_to_hbm [#allocation4], 16, %s2, [#allocation5]
    $region21: #{disc_cgan_loss.1} parent=1 // pred_fallthru
      _
    // Predicated region
    $region22: #{disc_cgan_loss.1} parent=1 // pred_check
      _
    $region23: #{disc_cgan_loss.1} parent=1 // pred_check_branch
      %68 = sbr.rel (0) target = $region25
    $region24: #{disc_cgan_loss.1} parent=1 // pred_region
      %69 = dma.done [#allocation5], 16
    $region25: #{disc_cgan_loss.1} parent=1 // pred_fallthru
      _
    %70 = sfence
    %71 = vsyncpa [#allocation5], 1

</llo_original>
